<compile_context>
chip_gen: v7x
topology: tpu7x:2x2x1
jax: 0.10.0
libtpu: 0.0.40
codegen_flags: <defaults>
</compile_context>

<pallas_src>
import jax
import jax.numpy as jnp
from jax.experimental import pallas as pl
from jax.experimental.pallas import tpu as pltpu

_TARGET_BLOCK_BYTES = 2 * 1024 * 1024  # ~2 MiB/block -> ~8 MiB resident (in+out, 2x buffered)


def _identity_kernel(x_ref, o_ref):
    # NoNorm.forward(x) == x : straight VMEM tile pass-through.
    o_ref[...] = x_ref[...]


def _pick_lane(total: int) -> int:
    """Largest lane width (multiple of 128, <= 8192) that divides the element count."""
    for cand in (8192, 4096, 2048, 1024, 512, 256, 128):
        if total % cand == 0:
            return cand
    return 0


def _pick_block_rows(rows: int, lane: int, itemsize: int) -> int:
    """Largest row-block that divides `rows`, respects sublane packing, fits the byte target."""
    # sublane packing: 8 rows for 32-bit, 16 for 16-bit, 32 for 8-bit dtypes
    sub = max(8, 32 // max(1, itemsize))
    max_rows = max(1, _TARGET_BLOCK_BYTES // (lane * itemsize))
    if rows <= max_rows:
        return rows  # whole row extent in one block (always layout-legal)
    d = (max_rows // sub) * sub
    while d >= sub:
        if rows % d == 0:
            return d
        d -= sub
    # TODO(synk): pathological (prime-ish) row counts fall back to one big block.
    return rows


def _no_norm_impl(x: jax.Array) -> jax.Array:
    """Pallas implementation of NoNorm (identity). Layout-agnostic (works for NCHW etc.)."""
    total = x.size
    itemsize = jnp.dtype(x.dtype).itemsize
    lane = _pick_lane(total)

    if lane == 0:
        # Element count not divisible by 128: single full-array block
        # (block == full array, so the (8,128) constraint does not apply).
        return pl.pallas_call(
            _identity_kernel,
            out_shape=jax.ShapeDtypeStruct(x.shape, x.dtype),
            input_output_aliases={0: 0},
        )(x)

    rows = total // lane
    block_rows = _pick_block_rows(rows, lane, itemsize)
    grid = (rows // block_rows,)

    x2 = x.reshape(rows, lane)  # lane-dense 2D slab
    out = pl.pallas_call(
        _identity_kernel,
        out_shape=jax.ShapeDtypeStruct((rows, lane), x.dtype),
        grid=grid,
        in_specs=[pl.BlockSpec((block_rows, lane), lambda i: (i, 0))],
        out_specs=pl.BlockSpec((block_rows, lane), lambda i: (i, 0)),
        input_output_aliases={0: 0},  # reuse the input HBM buffer for the output
        compiler_params=pltpu.CompilerParams(
            dimension_semantics=("parallel",),  # lets v7x's 2 TCs split the copy
        ),
    )(x2)
    return out.reshape(x.shape)


# jit so the reshape is a bitcast and the aliased input is an XLA intermediate
# (clean buffer reuse, no defensive copies).
no_norm = jax.jit(_no_norm_impl)


if __name__ == "__main__":
    key = jax.random.PRNGKey(0)
    x = jax.random.normal(key, (2, 4, 16, 16), dtype=jnp.float32)

    y = no_norm(x)
    jax.block_until_ready(y)

    assert y.shape == x.shape and y.dtype == x.dtype
    assert bool(jnp.all(y == x))
    print("KERNEL_OK")
</pallas_src>

<mosaic_0001>
module attributes {stable_mosaic.version = 11 : i64} {
  func.func @_identity_kernel(%arg0: i32, %arg1: memref<1x2048xf32, #tpu.memory_space<vmem>>, %arg2: memref<1x2048xf32, #tpu.memory_space<vmem>>) attributes {dimension_semantics = [#tpu.dimension_semantics<parallel>], iteration_bounds = array<i64: 1>, scalar_prefetch = 0 : i64, scratch_operands = 0 : i64, tpu.core_type = #tpu.core_type<tc>, window_params = [{transform_indices = @transform_0, window_bounds = array<i64: 1, 2048>}, {transform_indices = @transform_1, window_bounds = array<i64: 1, 2048>}]} {
    %c0 = arith.constant 0 : index
    %c0_0 = arith.constant 0 : index
    %0 = vector.load %arg1[%c0, %c0_0] : memref<1x2048xf32, #tpu.memory_space<vmem>>, vector<1x2048xf32>
    %c0_1 = arith.constant 0 : index
    %c0_2 = arith.constant 0 : index
    %1 = vector.load %arg2[%c0_1, %c0_2] : memref<1x2048xf32, #tpu.memory_space<vmem>>, vector<1x2048xf32>
    tpu.vector_store %arg2[%c0_1, %c0_2], %0 {strides = array<i32>} : memref<1x2048xf32, #tpu.memory_space<vmem>>, vector<1x2048xf32>,
    return
  }
  func.func @transform_0(%arg0: i32) -> (i32, i32) {
    %c0_i32 = arith.constant 0 : i32
    %c0_i32_0 = arith.constant 0 : i32
    return %arg0, %c0_i32 : i32, i32
  }
  func.func @transform_1(%arg0: i32) -> (i32, i32) {
    %c0_i32 = arith.constant 0 : i32
    %c0_i32_0 = arith.constant 0 : i32
    return %arg0, %c0_i32 : i32, i32
  }
}

</mosaic_0001>

<llo_original>
// kernel: _no_norm_impl.1
$region0: #{_no_norm_impl.1}
  #allocation0 [shape = 'u32[]', space=smem, size = 0x4, offset = 0x4, fixed_abs, tag = 'smem constant byte address 0x4 - core index']
  #allocation1 [shape = 'u32[144,128]{1,0:T(1,128)}', space=vmem, size = 0x12000, scoped, tag = 'internal scratch']
  %s0 = inlined_call_operand.vmem [shape: f32[1,2048], index: 0, kind: input, shape index: {}, may-alias: {0,1}]
  %s1 = inlined_call_operand.vmem [shape: f32[1,2048], index: 1, kind: output, shape index: {}, may-alias: {0,1}]
  %s2 = sld [smem:[#allocation0]]
  $region14: #{_no_norm_impl.1} parent=0
    _
  %s4 = ssub.s32 1, %s2
  %s5 = scalar_select 0, %s4, %s2
  // Predicated region
  $region2: #{_no_norm_impl.1} parent=0 // pred_check
    _
  $region3: #{_no_norm_impl.1} parent=0 // pred_check_branch
    %7 = sbr.rel (0) target = $region5
  $region4: #{_no_norm_impl.1} parent=0 // pred_region
    _
  $region5: #{_no_norm_impl.1} parent=0 // pred_fallthru
    _
  %v8 = vld [vmem:[%s0] sm:$0xff]
  %v9 = vld [vmem:[%s0 + $0x8] sm:$0xff]
  %10 = vst [vmem:[%s1] sm:$0xff] %v8
  %11 = vst [vmem:[%s1 + $0x8] sm:$0xff] %v9
  // Predicated region
  $region6: #{_no_norm_impl.1} parent=0 // pred_check
    _
  $region7: #{_no_norm_impl.1} parent=0 // pred_check_branch
    %13 = sbr.rel (0) target = $region9
  $region8: #{_no_norm_impl.1} parent=0 // pred_region
    _
  $region9: #{_no_norm_impl.1} parent=0 // pred_fallthru
    _
  // Predicated region
  $region10: #{_no_norm_impl.1} parent=0 // pred_check
    _
  $region11: #{_no_norm_impl.1} parent=0 // pred_check_branch
    %15 = sbr.rel (0) target = $region13
  $region12: #{_no_norm_impl.1} parent=0 // pred_region
    _
  $region13: #{_no_norm_impl.1} parent=0 // pred_fallthru
    _

</llo_original>
